<compile_context>
chip_gen: v5e
topology: v5e:2x2
jax: 0.10.0
libtpu: 0.0.40
codegen_flags: <defaults>
</compile_context>

<pallas_src>
import math
from functools import partial

import jax
import jax.numpy as jnp
from jax import lax
from jax.experimental import pallas as pl
from jax.experimental.pallas import tpu as pltpu


# ----------------------------------------------------------------------------
# helpers
# ----------------------------------------------------------------------------

def make_divisible(x, divisible_by=8):
    return int(math.ceil(x * 1.0 / divisible_by) * divisible_by)


def _round_up(x, m):
    return ((x + m - 1) // m) * m


def _apply_act(y, act):
    if act == "relu":
        return jnp.maximum(y, 0.0)
    if act == "relu6":
        return jnp.clip(y, 0.0, 6.0)
    if act == "hswish":
        return y * jnp.clip(y + 3.0, 0.0, 6.0) * (1.0 / 6.0)
    return y  # "linear"


_COMPILER_PARAMS = pltpu.CompilerParams(
    dimension_semantics=("parallel",),
    vmem_limit_bytes=32 * 1024 * 1024,
)


def _pick_batch_tile(n, per_sample_bytes, target_bytes=1 << 20):
    """Batch tile sized for ~target_bytes blocks, keeping >= 2 grid steps."""
    tb = max(1, min(n, target_bytes // max(int(per_sample_bytes), 1)))
    if n >= 2:
        tb = min(tb, -(-n // 2))   # >= 2 grid steps (v7x has 2 TensorCores)
    return int(tb)


# ----------------------------------------------------------------------------
# kernel 1: row-tiled matmul + folded BN + activation
# ----------------------------------------------------------------------------

def _mm_bn_act_kernel(x_ref, w_ref, sb_ref, o_ref, *, act):
    acc = jnp.dot(x_ref[...], w_ref[...], preferred_element_type=jnp.float32)
    sb = sb_ref[...]                              # (2, Cout) f32, lane-major
    y = acc * sb[0] + sb[1]
    o_ref[...] = _apply_act(y, act).astype(o_ref.dtype)


def matmul_bn_act(x2d, w, scale, bias, *, act, compute_dtype, out_dtype=None):
    """act((x2d @ w) * scale + bias), rows tiled, weights resident in VMEM."""
    m, k = x2d.shape
    k2, c = w.shape
    assert k == k2
    out_dtype = out_dtype or compute_dtype
    bytes_per = jnp.dtype(compute_dtype).itemsize

    tm = min(512, _round_up(m, 8))
    while tm > 8 and tm * max(k, c) * bytes_per > (2 << 20):   # ~<=2 MiB blocks
        tm //= 2
    if m >= 16:
        tm = min(tm, _round_up(-(-m // 2), 8))                 # >= 2 grid steps
    tm = max(8, tm - tm % 8)
    m_pad = _round_up(m, tm)

    xp = x2d.astype(compute_dtype)
    if m_pad > m:
        xp = jnp.pad(xp, ((0, m_pad - m), (0, 0)))
    sb = jnp.stack([scale, bias]).astype(jnp.float32)          # (2, Cout)

    out = pl.pallas_call(
        partial(_mm_bn_act_kernel, act=act),
        out_shape=jax.ShapeDtypeStruct((m_pad, c), out_dtype),
        grid_spec=pltpu.PrefetchScalarGridSpec(
            num_scalar_prefetch=0,
            grid=(m_pad // tm,),
            in_specs=[
                pl.BlockSpec((tm, k), lambda i: (i, 0)),
                pl.BlockSpec((k, c), lambda i: (0, 0)),
                pl.BlockSpec((2, c), lambda i: (0, 0)),
            ],
            out_specs=pl.BlockSpec((tm, c), lambda i: (i, 0)),
        ),
        compiler_params=_COMPILER_PARAMS,
    )(xp, w.astype(compute_dtype), sb)
    return out[:m]


def conv1x1_bn_act(x, p, *, act, compute_dtype):
    n, h, w_, c = x.shape
    cout = p["w"].shape[1]
    y = matmul_bn_act(x.reshape(n * h * w_, c), p["w"], p["scale"], p["bias"],
                      act=act, compute_dtype=compute_dtype)
    return y.reshape(n, h, w_, cout)


def _extract_patches(x, k, stride):
    """Plain-JAX im2col for the dense stem conv (wrapper-side data movement)."""
    n, hp, wp, c = x.shape
    ho = (hp - k) // stride + 1
    wo = (wp - k) // stride + 1
    slabs = []
    for kh in range(k):
        for kw in range(k):
            slabs.append(lax.slice(
                x, (0, kh, kw, 0),
                (n, kh + (ho - 1) * stride + 1, kw + (wo - 1) * stride + 1, c),
                (1, stride, stride, 1)))
    return jnp.concatenate(slabs, axis=-1), ho, wo          # (N, Ho, Wo, k*k*C)


def stem_conv_bn_act(x, p, *, stride, compute_dtype):
    k = p["w"].shape[0]
    cin = x.shape[-1]
    cout = p["w"].shape[-1]
    pd = k // 2
    xp = jnp.pad(x, ((0, 0), (pd, pd), (pd, pd), (0, 0)))
    patches, ho, wo = _extract_patches(xp, k, stride)
    n = x.shape[0]
    w2d = p["w"].reshape(k * k * cin, cout)                  # HWIO -> (k*k*Cin, Cout)
    y = matmul_bn_act(patches.reshape(n * ho * wo, k * k * cin), w2d,
                      p["scale"], p["bias"], act="hswish",
                      compute_dtype=compute_dtype)
    return y.reshape(n, ho, wo, cout)


# ----------------------------------------------------------------------------
# kernel 2: depthwise KxK conv + folded BN + activation
# ----------------------------------------------------------------------------

def _dw_bn_act_kernel(x_ref, w_ref, sb_ref, o_ref, *, k, act):
    tb, hp, wp, c = x_ref.shape
    hv = hp - k + 1
    wv = wp - k + 1
    w = w_ref[...].astype(jnp.float32)            # (k, k, C)
    sb = sb_ref[...]                              # (2, C) f32
    acc = jnp.zeros((tb, hv, wv, c), jnp.float32)
    for kh in range(k):
        for kw in range(k):
            tap = x_ref[:, kh:kh + hv, kw:kw + wv, :].astype(jnp.float32)
            acc = acc + tap * w[kh, kw][None, None, None, :]
    y = acc * sb[0] + sb[1]
    o_ref[...] = _apply_act(y, act).astype(o_ref.dtype)


def dw_conv_bn_act(x, p, *, k, stride, act, compute_dtype):
    n, h, w_, c = x.shape
    pd = k // 2
    xp = jnp.pad(x.astype(compute_dtype), ((0, 0), (pd, pd), (pd, pd), (0, 0)))
    hp, wp = h + 2 * pd, w_ + 2 * pd
    hv, wv = hp - k + 1, wp - k + 1
    bytes_per = jnp.dtype(compute_dtype).itemsize
    tb = _pick_batch_tile(n, hp * wp * c * bytes_per)
    n_pad = _round_up(n, tb)
    if n_pad > n:
        xp = jnp.pad(xp, ((0, n_pad - n), (0, 0), (0, 0), (0, 0)))
    sb = jnp.stack([p["scale"], p["bias"]]).astype(jnp.float32)

    out = pl.pallas_call(
        partial(_dw_bn_act_kernel, k=k, act=act),
        out_shape=jax.ShapeDtypeStruct((n_pad, hv, wv, c), compute_dtype),
        grid_spec=pltpu.PrefetchScalarGridSpec(
            num_scalar_prefetch=0,
            grid=(n_pad // tb,),
            in_specs=[
                pl.BlockSpec((tb, hp, wp, c), lambda b: (b, 0, 0, 0)),
                pl.BlockSpec((k, k, c), lambda b: (0, 0, 0)),
                pl.BlockSpec((2, c), lambda b: (0, 0)),
            ],
            out_specs=pl.BlockSpec((tb, hv, wv, c), lambda b: (b, 0, 0, 0)),
        ),
        compiler_params=_COMPILER_PARAMS,
    )(xp, p["w"].astype(compute_dtype), sb)
    out = out[:n]
    if stride > 1:
        # TODO(synk): stride-2 depthwise is computed at stride 1 and
        # subsampled here; a polyphase kernel would avoid the extra taps.
        out = out[:, ::stride, ::stride, :]
    return out


# ----------------------------------------------------------------------------
# kernel 3: fused SE block (pool + FC + ReLU + FC + hard-sigmoid + rescale)
# ----------------------------------------------------------------------------

def _se_kernel(x_ref, w1_ref, b1_ref, w2_ref, b2_ref, o_ref):
    x = x_ref[...].astype(jnp.float32)                       # (TB, HW, C)
    hw = x.shape[1]
    mean = jnp.sum(x, axis=1) * (1.0 / hw)                   # (TB, C)  f32
    h = jnp.dot(mean, w1_ref[...], preferred_element_type=jnp.float32) + b1_ref[...]
    h = jnp.maximum(h, 0.0)                                  # (TB, R)
    g = jnp.dot(h, w2_ref[...], preferred_element_type=jnp.float32) + b2_ref[...]
    g = jnp.clip(g + 3.0, 0.0, 6.0) * (1.0 / 6.0)            # hard-sigmoid
    o_ref[...] = (x * g[:, None, :]).astype(o_ref.dtype)


def se_module(x, p, *, compute_dtype):
    n, h, w_, c = x.shape
    hw = h * w_
    r = p["w1"].shape[1]
    xf = x.reshape(n, hw, c).astype(compute_dtype)
    bytes_per = jnp.dtype(compute_dtype).itemsize
    tb = _pick_batch_tile(n, hw * c * bytes_per)
    n_pad = _round_up(n, tb)
    if n_pad > n:
        xf = jnp.pad(xf, ((0, n_pad - n), (0, 0), (0, 0)))

    out = pl.pallas_call(
        _se_kernel,
        out_shape=jax.ShapeDtypeStruct((n_pad, hw, c), compute_dtype),
        grid_spec=pltpu.PrefetchScalarGridSpec(
            num_scalar_prefetch=0,
            grid=(n_pad // tb,),
            in_specs=[
                pl.BlockSpec((tb, hw, c), lambda b: (b, 0, 0)),
                pl.BlockSpec((c, r), lambda b: (0, 0)),
                pl.BlockSpec((1, r), lambda b: (0, 0)),
                pl.BlockSpec((r, c), lambda b: (0, 0)),
                pl.BlockSpec((1, c), lambda b: (0, 0)),
            ],
            out_specs=pl.BlockSpec((tb, hw, c), lambda b: (b, 0, 0)),
        ),
        compiler_params=_COMPILER_PARAMS,
    )(xf, p["w1"], p["b1"].reshape(1, r), p["w2"], p["b2"].reshape(1, c))
    return out[:n].reshape(n, h, w_, c)


# ----------------------------------------------------------------------------
# kernel 4: head global-avg-pool fused with FC + activation
# ----------------------------------------------------------------------------

def _pool_fc_act_kernel(x_ref, w_ref, sb_ref, o_ref, *, act):
    x = x_ref[...].astype(jnp.float32)                       # (TB, HW, C)
    hw = x.shape[1]
    mean = jnp.sum(x, axis=1) * (1.0 / hw)                   # (TB, C)  f32
    w = w_ref[...].astype(jnp.float32)                       # (C, D)
    sb = sb_ref[...]
    y = jnp.dot(mean, w, preferred_element_type=jnp.float32) * sb[0] + sb[1]
    o_ref[...] = _apply_act(y, act).astype(o_ref.dtype)


def global_pool_fc_act(x, p, *, act, compute_dtype):
    n, h, w_, c = x.shape
    hw = h * w_
    d = p["w"].shape[1]
    xf = x.reshape(n, hw, c).astype(compute_dtype)
    n_pad = _round_up(n, 8)                 # output rows: multiple of 8
    tb = min(n_pad, 256)
    n_pad = _round_up(n_pad, tb)
    if n_pad > n:
        xf = jnp.pad(xf, ((0, n_pad - n), (0, 0), (0, 0)))
    sb = jnp.stack([p["scale"], p["bias"]]).astype(jnp.float32)

    out = pl.pallas_call(
        partial(_pool_fc_act_kernel, act=act),
        out_shape=jax.ShapeDtypeStruct((n_pad, d), compute_dtype),
        grid_spec=pltpu.PrefetchScalarGridSpec(
            num_scalar_prefetch=0,
            grid=(n_pad // tb,),
            in_specs=[
                pl.BlockSpec((tb, hw, c), lambda b: (b, 0, 0)),
                pl.BlockSpec((c, d), lambda b: (0, 0)),
                pl.BlockSpec((2, d), lambda b: (0, 0)),
            ],
            out_specs=pl.BlockSpec((tb, d), lambda b: (b, 0)),
        ),
        compiler_params=_COMPILER_PARAMS,
    )(xf, p["w"].astype(compute_dtype), sb)
    return out[:n]


# ----------------------------------------------------------------------------
# full forward (eval mode) + parameters + pure-JAX reference
# ----------------------------------------------------------------------------

_MBV3_SMALL_CFG = [
    # in_c, expansion, out_c, k, stride, se,   act
    (16, 1.0,       16, 3, 2, True,  "relu"),
    (16, 4.5,       24, 3, 2, False, "relu"),
    (24, 88.0 / 24, 24, 3, 1, False, "relu"),
    (24, 4.0,       40, 5, 2, True,  "hswish"),
    (40, 6.0,       40, 5, 1, True,  "hswish"),
    (40, 6.0,       40, 5, 1, True,  "hswish"),
    (40, 3.0,       48, 5, 1, True,  "hswish"),
    (48, 3.0,       48, 5, 1, True,  "hswish"),
    (48, 6.0,       96, 5, 2, True,  "hswish"),
    (96, 6.0,       96, 5, 1, True,  "hswish"),
    (96, 6.0,       96, 5, 1, True,  "hswish"),
]


def mobilenet_v3_small_pallas(x_nchw, params, *, compute_dtype=jnp.float32):
    """MobileNetV3_Small forward.  x_nchw: (N, 3, H, W) f32 -> (N, classes) f32."""
    x = jnp.transpose(x_nchw, (0, 2, 3, 1))          # NHWC: channels -> lanes
    x = stem_conv_bn_act(x, params["stem"], stride=2, compute_dtype=compute_dtype)

    for blk in params["blocks"]:
        inp = x
        if blk["expand"] is not None:
            x = conv1x1_bn_act(x, blk["expand"], act=blk["act"],
                               compute_dtype=compute_dtype)
        x = dw_conv_bn_act(x, blk["dw"], k=blk["k"], stride=blk["stride"],
                           act=blk["act"], compute_dtype=compute_dtype)
        if blk["se"] is not None:
            x = se_module(x, blk["se"], compute_dtype=compute_dtype)
        x = conv1x1_bn_act(x, blk["project"], act="linear",
                           compute_dtype=compute_dtype)
        if blk["skip"]:
            x = (x.astype(jnp.float32) + inp.astype(jnp.float32)).astype(compute_dtype)

    x = conv1x1_bn_act(x, params["head1"], act="hswish", compute_dtype=compute_dtype)
    x = global_pool_fc_act(x, params["head2"], act="hswish",
                           compute_dtype=compute_dtype)          # (N, 1280)
    # Dropout2d(p=0.2) is the identity in eval mode.
    cls = params["cls"]
    ones = jnp.ones((cls["w"].shape[1],), jnp.float32)
    logits = matmul_bn_act(x, cls["w"], ones, cls["b"], act="linear",
                           compute_dtype=compute_dtype, out_dtype=jnp.float32)
    return logits


def init_params(key, num_classes=1000):
    """Deterministic synthetic params (BatchNorm folded to scale/bias, eval)."""
    keys = iter(jax.random.split(key, 256))
    nk = lambda: next(keys)

    def conv_p(cin, cout):
        return dict(
            w=jax.random.normal(nk(), (cin, cout), jnp.float32) / math.sqrt(cin),
            scale=1.0 + 0.1 * jax.random.normal(nk(), (cout,), jnp.float32),
            bias=0.1 * jax.random.normal(nk(), (cout,), jnp.float32))

    def dw_p(k, c):
        return dict(
            w=jax.random.normal(nk(), (k, k, c), jnp.float32) / float(k),
            scale=1.0 + 0.1 * jax.random.normal(nk(), (c,), jnp.float32),
            bias=0.1 * jax.random.normal(nk(), (c,), jnp.float32))

    def se_p(c):
        r = make_divisible(c // 4)
        return dict(
            w1=jax.random.normal(nk(), (c, r), jnp.float32) / math.sqrt(c),
            b1=0.1 * jax.random.normal(nk(), (r,), jnp.float32),
            w2=jax.random.normal(nk(), (r, c), jnp.float32) / math.sqrt(r),
            b2=0.1 * jax.random.normal(nk(), (c,), jnp.float32))

    params = {"stem": dict(
        w=jax.random.normal(nk(), (3, 3, 3, 16), jnp.float32) / math.sqrt(27.0),
        scale=1.0 + 0.1 * jax.random.normal(nk(), (16,), jnp.float32),
        bias=0.1 * jax.random.normal(nk(), (16,), jnp.float32))}

    blocks = []
    for in_c, exp, out_c, k, stride, se, act in _MBV3_SMALL_CFG:
        hidden = int(round(in_c * exp))
        blocks.append(dict(
            k=k, stride=stride, act=act,
            skip=(stride == 1 and in_c == out_c),
            expand=conv_p(in_c, hidden) if hidden != in_c else None,
            dw=dw_p(k, hidden),
            se=se_p(hidden) if se else None,
            project=conv_p(hidden, out_c)))
    params["blocks"] = blocks
    params["head1"] = conv_p(96, 576)
    params["head2"] = dict(                       # Conv2d(576,1280,1,bias=False): no BN
        w=jax.random.normal(nk(), (576, 1280), jnp.float32) / math.sqrt(576.0),
        scale=jnp.ones((1280,), jnp.float32),
        bias=jnp.zeros((1280,), jnp.float32))
    params["cls"] = dict(
        w=jax.random.normal(nk(), (1280, num_classes), jnp.float32) / math.sqrt(1280.0),
        b=0.1 * jax.random.normal(nk(), (num_classes,), jnp.float32))
    return params


_HP = lax.Precision.HIGHEST


def _hswish(x):
    return x * jnp.clip(x + 3.0, 0.0, 6.0) / 6.0


def _hsigmoid(x):
    return jnp.clip(x + 3.0, 0.0, 6.0) / 6.0


def _act_ref(x, act):
    if act == "relu":
        return jnp.maximum(x, 0.0)
    if act == "relu6":
        return jnp.clip(x, 0.0, 6.0)
    if act == "hswish":
        return _hswish(x)
    return x


def mobilenet_v3_small_ref(x_nchw, params):
    """Pure-JAX float32 reference (no Pallas) for validation."""
    x = jnp.transpose(x_nchw, (0, 2, 3, 1))
    p = params["stem"]
    y = lax.conv_general_dilated(x, p["w"], (2, 2), [(1, 1), (1, 1)],
                                 dimension_numbers=("NHWC", "HWIO", "NHWC"),
                                 precision=_HP)
    x = _hswish(y * p["scale"] + p["bias"])
    for blk in params["blocks"]:
        inp = x
        if blk["expand"] is not None:
            e = blk["expand"]
            x = _act_ref(jnp.einsum("nhwc,cd->nhwd", x, e["w"], precision=_HP)
                         * e["scale"] + e["bias"], blk["act"])
        d, k, c = blk["dw"], blk["k"], x.shape[-1]
        y = lax.conv_general_dilated(x, d["w"].reshape(k, k, 1, c),
                                     (blk["stride"],) * 2, [(k // 2, k // 2)] * 2,
                                     dimension_numbers=("NHWC", "HWIO", "NHWC"),
                                     feature_group_count=c, precision=_HP)
        x = _act_ref(y * d["scale"] + d["bias"], blk["act"])
        if blk["se"] is not None:
            s = blk["se"]
            m = jnp.mean(x, axis=(1, 2))
            h = jnp.maximum(jnp.dot(m, s["w1"], precision=_HP) + s["b1"], 0.0)
            g = _hsigmoid(jnp.dot(h, s["w2"], precision=_HP) + s["b2"])
            x = x * g[:, None, None, :]
        pr = blk["project"]
        x = jnp.einsum("nhwc,cd->nhwd", x, pr["w"], precision=_HP) * pr["scale"] + pr["bias"]
        if blk["skip"]:
            x = x + inp
    p = params["head1"]
    x = _hswish(jnp.einsum("nhwc,cd->nhwd", x, p["w"], precision=_HP)
                * p["scale"] + p["bias"])
    x = jnp.mean(x, axis=(1, 2))
    p = params["head2"]
    x = _hswish(jnp.dot(x, p["w"], precision=_HP) * p["scale"] + p["bias"])
    p = params["cls"]
    return jnp.dot(x, p["w"], precision=_HP) + p["b"]


if __name__ == "__main__":
    key = jax.random.PRNGKey(0)
    kx, kp = jax.random.split(key)
    N, H, W = 2, 32, 32
    num_classes = 64
    x = jax.random.normal(kx, (N, 3, H, W), jnp.float32)
    params = init_params(kp, num_classes=num_classes)

    ref = mobilenet_v3_small_ref(x, params)
    ref_scale = float(jnp.maximum(jnp.max(jnp.abs(ref)), 1e-3))

    # float32 activation path: tight check against the pure-JAX reference.
    out = mobilenet_v3_small_pallas(x, params, compute_dtype=jnp.float32)
    out = jax.block_until_ready(out)
    assert out.shape == (N, num_classes)
    err = float(jnp.max(jnp.abs(out - ref)))
    assert err < 0.05 * ref_scale + 1e-3, f"f32 mismatch: max|diff|={err}"

    # bfloat16 activation path (halved HBM traffic, f32 accumulation): loose check.
    out_bf16 = mobilenet_v3_small_pallas(x, params, compute_dtype=jnp.bfloat16)
    out_bf16 = jax.block_until_ready(out_bf16).astype(jnp.float32)
    assert bool(jnp.all(jnp.isfinite(out_bf16)))
    rel = float(jnp.max(jnp.abs(out_bf16 - ref))) / ref_scale
    assert rel < 0.25, f"bf16 drift too large: {rel}"

    print("KERNEL_OK")
</pallas_src>

<mosaic_0001>
module attributes {stable_mosaic.version = 11 : i64} {
  func.func @_mm_bn_act_kernel(%arg0: i32, %arg1: memref<256x27xf32, #tpu.memory_space<vmem>>, %arg2: memref<27x16xf32, #tpu.memory_space<vmem>>, %arg3: memref<2x16xf32, #tpu.memory_space<vmem>>, %arg4: memref<256x16xf32, #tpu.memory_space<vmem>>) attributes {dimension_semantics = [#tpu.dimension_semantics<parallel>], iteration_bounds = array<i64: 2>, scalar_prefetch = 0 : i64, scratch_operands = 0 : i64, tpu.core_type = #tpu.core_type<tc>, window_params = [{transform_indices = @transform_0, window_bounds = array<i64: 256, 27>}, {pipeline_mode = #tpu.pipeline_mode<synchronous>, transform_indices = @transform_1, window_bounds = array<i64: 27, 16>}, {pipeline_mode = #tpu.pipeline_mode<synchronous>, transform_indices = @transform_2, window_bounds = array<i64: 2, 16>}, {transform_indices = @transform_3, window_bounds = array<i64: 256, 16>}]} {
    %c0 = arith.constant 0 : index
    %c0_0 = arith.constant 0 : index
    %0 = vector.load %arg1[%c0, %c0_0] : memref<256x27xf32, #tpu.memory_space<vmem>>, vector<256x27xf32>
    %c0_1 = arith.constant 0 : index
    %c0_2 = arith.constant 0 : index
    %1 = vector.load %arg2[%c0_1, %c0_2] : memref<27x16xf32, #tpu.memory_space<vmem>>, vector<27x16xf32>
    %cst = arith.constant dense<0.000000e+00> : vector<256x16xf32>
    %2 = tpu.matmul %0, %1, %cst {dimension_numbers = #tpu.dot_dimension_numbers<[1], [0], [0], [1], [0, 0, 1, 1], [], []>} : vector<256x27xf32>, vector<27x16xf32>, vector<256x16xf32> -> vector<256x16xf32>
    %c0_3 = arith.constant 0 : index
    %c0_4 = arith.constant 0 : index
    %3 = vector.load %arg3[%c0_3, %c0_4] : memref<2x16xf32, #tpu.memory_space<vmem>>, vector<2x16xf32>
    %4 = vector.extract_strided_slice %3 {offsets = [0, 0], sizes = [1, 16], strides = [1, 1]} : vector<2x16xf32> to vector<1x16xf32>
    %5 = vector.shape_cast %4 : vector<1x16xf32> to vector<16xf32>
    %6 = vector.shape_cast %5 : vector<16xf32> to vector<1x16xf32>
    %7 = vector.broadcast %6 : vector<1x16xf32> to vector<256x16xf32>
    %8 = arith.mulf %2, %7 : vector<256x16xf32>
    %9 = vector.extract_strided_slice %3 {offsets = [1, 0], sizes = [1, 16], strides = [1, 1]} : vector<2x16xf32> to vector<1x16xf32>
    %10 = vector.shape_cast %9 : vector<1x16xf32> to vector<16xf32>
    %11 = vector.shape_cast %10 : vector<16xf32> to vector<1x16xf32>
    %12 = vector.broadcast %11 : vector<1x16xf32> to vector<256x16xf32>
    %13 = arith.addf %8, %12 : vector<256x16xf32>
    %cst_5 = arith.constant 3.000000e+00 : f32
    %14 = vector.broadcast %cst_5 : f32 to vector<256x16xf32>
    %15 = arith.addf %13, %14 : vector<256x16xf32>
    %cst_6 = arith.constant 0.000000e+00 : f32
    %cst_7 = arith.constant 6.000000e+00 : f32
    %16 = vector.broadcast %cst_6 : f32 to vector<256x16xf32>
    %17 = arith.maximumf %16, %15 : vector<256x16xf32>
    %18 = vector.broadcast %cst_7 : f32 to vector<256x16xf32>
    %19 = arith.minimumf %18, %17 : vector<256x16xf32>
    %20 = arith.mulf %13, %19 : vector<256x16xf32>
    %cst_8 = arith.constant 0.166666672 : f32
    %21 = vector.broadcast %cst_8 : f32 to vector<256x16xf32>
    %22 = arith.mulf %20, %21 : vector<256x16xf32>
    %c0_9 = arith.constant 0 : index
    %c0_10 = arith.constant 0 : index
    %23 = vector.load %arg4[%c0_9, %c0_10] : memref<256x16xf32, #tpu.memory_space<vmem>>, vector<256x16xf32>
    tpu.vector_store %arg4[%c0_9, %c0_10], %22 {strides = array<i32>} : memref<256x16xf32, #tpu.memory_space<vmem>>, vector<256x16xf32>,
    return
  }
  func.func @transform_0(%arg0: i32) -> (i32, i32) {
    %c0_i32 = arith.constant 0 : i32
    %c0_i32_0 = arith.constant 0 : i32
    return %arg0, %c0_i32 : i32, i32
  }
  func.func @transform_1(%arg0: i32) -> (i32, i32) {
    %c0_i32 = arith.constant 0 : i32
    %c0_i32_0 = arith.constant 0 : i32
    %c0_i32_1 = arith.constant 0 : i32
    return %c0_i32, %c0_i32_0 : i32, i32
  }
  func.func @transform_2(%arg0: i32) -> (i32, i32) {
    %c0_i32 = arith.constant 0 : i32
    %c0_i32_0 = arith.constant 0 : i32
    %c0_i32_1 = arith.constant 0 : i32
    return %c0_i32, %c0_i32_0 : i32, i32
  }
  func.func @transform_3(%arg0: i32) -> (i32, i32) {
    %c0_i32 = arith.constant 0 : i32
    %c0_i32_0 = arith.constant 0 : i32
    return %arg0, %c0_i32 : i32, i32
  }
}

</mosaic_0001>

<llo_original>
// kernel: tpu_custom_call.1
$region0: #{tpu_custom_call.1}
  #allocation0 [shape = 'u32[]', space=smem, size = 0x4, offset = 0x4, fixed_abs, tag = 'smem constant byte address 0x4 - core index']
  #allocation1 [shape = 'u32[72,128]{1,0:T(1,128)}', space=vmem, size = 0x9000, scoped, tag = 'internal scratch']
  %s0 = inlined_call_operand.vmem [shape: f32[512,27], index: 0, kind: input, shape index: {}]
  %s1 = inlined_call_operand.vmem [shape: f32[27,16], index: 1, kind: input, shape index: {}]
  %s2 = inlined_call_operand.vmem [shape: f32[2,16], index: 2, kind: input, shape index: {}]
  %s3 = inlined_call_operand.vmem [shape: f32[512,16], index: 3, kind: output, shape index: {}]
  %s4 = sld [smem:[#allocation0]]
  $region45: #{tpu_custom_call.1} parent=0
    _
  %s6 = ssub.s32 1, %s4
  %s7 = scalar_select 0, %s6, %s4
  loop: start=0, step=1, limit=4
  $region2: #{tpu_custom_call.1} parent=0 // loop_pre_header
    _
  $region3: #{tpu_custom_call.1} parent=0 // loop_header
    %s9 = sphi 0, %s13
    %p10 = scmp.ge.s32.totalorder %s9, 4
    %s19 = sphi 0, %s21
    %s22 = sphi 0, %s19
    %s23 = sphi 0, %s22
    %s39 = sphi 0, %s23
    %s43 = sphi 0, %s43
    %s45 = sphi 0, %s43
    %s46 = sphi 0, %s45
    %s60 = sphi 0, %s46
    %s64 = sphi 0, %s64
    %s66 = sphi 0, %s64
    %s67 = sphi 0, %s66
    %s81 = sphi 0, %s67
    %s87 = sphi 0, %s89
    %s90 = sphi 0, %s87
    %s91 = sphi 0, %s90
    %s107 = sphi 0, %s91
  $region4: #{tpu_custom_call.1} parent=0 // loop_header_branch
    %12 = sbr.rel (%p10) target = $region8
  $region5: #{tpu_custom_call.1} parent=0 // loop_body
    %s14 = ssub.s32 %s9, 1
    %s15 = ssub.s32 %s9, 2
    %s16 = sadd.s32 %s9, 1
    %s17 = ssub.s32 %s9, %s16
    %p18 = scmp.eq.s32.totalorder %s17, 0
    %s20 = sadd.s32 %s19, 1
    %s21 = scalar_select %p18, %s19, %s20
    %p24 = pneg %p18
    %p25 = scmp.eq.s32.totalorder %s9, 1
    %p26 = por %p24, %p25
    %p27 = scmp.ne.s32.totalorder %s19, %s22
    %p28 = scmp.eq.s32.totalorder %s9, 0
    %p29 = por %p27, %p28
    %p30 = scmp.ne.s32.totalorder %s19, %s22
    %p31 = scmp.eq.s32.totalorder %s14, 1
    %p32 = por %p30, %p31
    %p33 = scmp.ne.s32.totalorder %s22, %s23
    %p34 = scmp.eq.s32.totalorder %s14, 0
    %p35 = por %p33, %p34
    %p36 = scmp.ne.s32.totalorder %s22, %s23
    %p37 = scmp.eq.s32.totalorder %s15, 1
    %p38 = por %p36, %p37
    %p40 = scmp.ne.s32.totalorder %s23, %s39
    %p41 = scmp.eq.s32.totalorder %s15, 0
    %p42 = por %p40, %p41
    %s44 = sadd.s32 %s43, 1
    %p47 = scmp.eq.s32.totalorder %s9, 1
    %p48 = scmp.ne.s32.totalorder %s43, %s45
    %p49 = scmp.eq.s32.totalorder %s9, 0
    %p50 = por %p48, %p49
    %p51 = scmp.ne.s32.totalorder %s43, %s45
    %p52 = scmp.eq.s32.totalorder %s14, 1
    %p53 = por %p51, %p52
    %p54 = scmp.ne.s32.totalorder %s45, %s46
    %p55 = scmp.eq.s32.totalorder %s14, 0
    %p56 = por %p54, %p55
    %p57 = scmp.ne.s32.totalorder %s45, %s46
    %p58 = scmp.eq.s32.totalorder %s15, 1
    %p59 = por %p57, %p58
    %p61 = scmp.ne.s32.totalorder %s46, %s60
    %p62 = scmp.eq.s32.totalorder %s15, 0
    %p63 = por %p61, %p62
    %s65 = sadd.s32 %s64, 1
    %p68 = scmp.eq.s32.totalorder %s9, 1
    %p69 = scmp.ne.s32.totalorder %s64, %s66
    %p70 = scmp.eq.s32.totalorder %s9, 0
    %p71 = por %p69, %p70
    %p72 = scmp.ne.s32.totalorder %s64, %s66
    %p73 = scmp.eq.s32.totalorder %s14, 1
    %p74 = por %p72, %p73
    %p75 = scmp.ne.s32.totalorder %s66, %s67
    %p76 = scmp.eq.s32.totalorder %s14, 0
    %p77 = por %p75, %p76
    %p78 = scmp.ne.s32.totalorder %s66, %s67
    %p79 = scmp.eq.s32.totalorder %s15, 1
    %p80 = por %p78, %p79
    %p82 = scmp.ne.s32.totalorder %s67, %s81
    %p83 = scmp.eq.s32.totalorder %s15, 0
    %p84 = por %p82, %p83
    %s85 = ssub.s32 %s9, %s16
    %p86 = scmp.eq.s32.totalorder %s85, 0
    %s88 = sadd.s32 %s87, 1
    %s89 = scalar_select %p86, %s87, %s88
    %p92 = pneg %p86
    %p93 = scmp.eq.s32.totalorder %s9, 1
    %p94 = por %p92, %p93
    %p95 = scmp.ne.s32.totalorder %s87, %s90
    %p96 = scmp.eq.s32.totalorder %s9, 0
    %p97 = por %p95, %p96
    %p98 = scmp.ne.s32.totalorder %s87, %s90
    %p99 = scmp.eq.s32.totalorder %s14, 1
    %p100 = por %p98, %p99
    %p101 = scmp.ne.s32.totalorder %s90, %s91
    %p102 = scmp.eq.s32.totalorder %s14, 0
    %p103 = por %p101, %p102
    %p104 = scmp.ne.s32.totalorder %s90, %s91
    %p105 = scmp.eq.s32.totalorder %s15, 1
    %p106 = por %p104, %p105
    %p108 = scmp.ne.s32.totalorder %s91, %s107
    %p109 = scmp.eq.s32.totalorder %s15, 0
    %p110 = por %p108, %p109
    %p111 = scmp.le.s32.totalorder 1, %s9
    %p112 = scmp.lt.s32.totalorder %s9, 3
    %p113 = pnand %p111, %p112
    %p114 = pneg %p113
    // Predicated region
    $region9: #{tpu_custom_call.1} parent=5 // pred_check
      _
    $region10: #{tpu_custom_call.1} parent=5 // pred_check_branch
      %116 = sbr.rel (%p113) target = $region12
    $region11: #{tpu_custom_call.1} parent=5 // pred_region
      %s117 = ssub.s32 %s9, 1
      // Predicated region
      $region13: #{tpu_custom_call.1} parent=11 // pred_check
        %p118 = pneg %p56
      $region14: #{tpu_custom_call.1} parent=11 // pred_check_branch
        %120 = sbr.rel (%p118) target = $region16
      $region15: #{tpu_custom_call.1} parent=11 // pred_region
        _
      $region16: #{tpu_custom_call.1} parent=11 // pred_fallthru
        _
      // Predicated region
      $region17: #{tpu_custom_call.1} parent=11 // pred_check
        %p121 = pneg %p77
      $region18: #{tpu_custom_call.1} parent=11 // pred_check_branch
        %123 = sbr.rel (%p121) target = $region20
      $region19: #{tpu_custom_call.1} parent=11 // pred_region
        _
      $region20: #{tpu_custom_call.1} parent=11 // pred_fallthru
        _
    $region12: #{tpu_custom_call.1} parent=5 // pred_fallthru
      _
    %p124 = scmp.lt.s32.totalorder %s9, 2
    // Predicated region
    $region21: #{tpu_custom_call.1} parent=5 // pred_check
      %p125 = pneg %p124
    $region22: #{tpu_custom_call.1} parent=5 // pred_check_branch
      %127 = sbr.rel (%p125) target = $region24
    $region23: #{tpu_custom_call.1} parent=5 // pred_region
      // Predicated region
      $region25: #{tpu_custom_call.1} parent=23 // pred_check
        %p128 = pneg %p29
      $region26: #{tpu_custom_call.1} parent=23 // pred_check_branch
        %130 = sbr.rel (%p128) target = $region28
      $region27: #{tpu_custom_call.1} parent=23 // pred_region
        %s131 = smul.u32 32, %s9
        %p132 = scmp.lt.s32.totalorder %s131, 63
        %s133 = scalar_select %p132, %s131, 63
        %s134 = smul.addr %s133, 8
        %s135 = scalar_lea.vmem %s0, %s134
        %s136 = smul.u32 32, %s9
      $region28: #{tpu_custom_call.1} parent=23 // pred_fallthru
        _
    $region24: #{tpu_custom_call.1} parent=5 // pred_fallthru
      _
    %p137 = scmp.le.s32.totalorder 1, %s9
    %p138 = scmp.lt.s32.totalorder %s9, 3
    %p139 = pnand %p137, %p138
    %p140 = pneg %p139
    // Predicated region
    $region29: #{tpu_custom_call.1} parent=5 // pred_check
      _
    $region30: #{tpu_custom_call.1} parent=5 // pred_check_branch
      %142 = sbr.rel (%p139) target = $region32
    $region31: #{tpu_custom_call.1} parent=5 // pred_region
      %s143 = ssub.s32 %s9, 1
      %s144 = smul.u32 32, %s14
      %p145 = scmp.lt.s32.totalorder %s144, 63
      %s146 = scalar_select %p145, %s144, 63
      %s147 = smul.addr %s146, 8
      %s148 = scalar_lea.vmem %s0, %s147
      %p149 = pneg %p35
      %p150 = pneg %p32
      %p151 = pneg %p56
      %p152 = pneg %p53
      %p153 = pneg %p77
      %p154 = pneg %p74
      %p155 = pneg %p103
      %p156 = pneg %p100
      %s157 = smul.u32 32, %s14
      %p158 = scmp.lt.s32.totalorder %s157, 63
      %s159 = scalar_select %p158, %s157, 63
      %s160 = smul.addr %s159, 8
      %s161 = scalar_lea.vmem %s3, %s160
      %s162 = smul.u32 32, %s14
      %p163 = scmp.lt.s32.totalorder %s162, 63
      %s164 = scalar_select %p163, %s162, 63
      %s165 = smul.addr %s164, 8
      %s166 = scalar_lea.vmem %s0, %s165
      %s167 = smul.u32 32, %s14
      %s168 = smul.u32 32, %s14
      %p169 = scmp.lt.s32.totalorder %s168, 63
      %s170 = scalar_select %p169, %s168, 63
      %s171 = smul.addr %s170, 8
      %s172 = scalar_lea.vmem %s3, %s171
      %s173 = smul.u32 32, %s14
      %v174 = vld [vmem:[%s166] sm:$0xff]
      %v175 = vld [vmem:[%s166 + $0x8] sm:$0xff]
      %v176 = vld [vmem:[%s166 + $0x10] sm:$0xff]
      %v177 = vld [vmem:[%s166 + $0x18] sm:$0xff]
      %v178 = vld [vmem:[%s166 + $0x20] sm:$0xff]
      %v179 = vld [vmem:[%s166 + $0x28] sm:$0xff]
      %v180 = vld [vmem:[%s166 + $0x30] sm:$0xff]
      %v181 = vld [vmem:[%s166 + $0x38] sm:$0xff]
      %v182 = vld [vmem:[%s166 + $0x40] sm:$0xff]
      %v183 = vld [vmem:[%s166 + $0x48] sm:$0xff]
      %v184 = vld [vmem:[%s166 + $0x50] sm:$0xff]
      %v185 = vld [vmem:[%s166 + $0x58] sm:$0xff]
      %v186 = vld [vmem:[%s166 + $0x60] sm:$0xff]
      %v187 = vld [vmem:[%s166 + $0x68] sm:$0xff]
      %v188 = vld [vmem:[%s166 + $0x70] sm:$0xff]
      %v189 = vld [vmem:[%s166 + $0x78] sm:$0xff]
      %v190 = vld [vmem:[%s166 + $0x80] sm:$0xff]
      %v191 = vld [vmem:[%s166 + $0x88] sm:$0xff]
      %v192 = vld [vmem:[%s166 + $0x90] sm:$0xff]
      %v193 = vld [vmem:[%s166 + $0x98] sm:$0xff]
      %v194 = vld [vmem:[%s166 + $0xa0] sm:$0xff]
      %v195 = vld [vmem:[%s166 + $0xa8] sm:$0xff]
      %v196 = vld [vmem:[%s166 + $0xb0] sm:$0xff]
      %v197 = vld [vmem:[%s166 + $0xb8] sm:$0xff]
      %v198 = vld [vmem:[%s166 + $0xc0] sm:$0xff]
      %v199 = vld [vmem:[%s166 + $0xc8] sm:$0xff]
      %v200 = vld [vmem:[%s166 + $0xd0] sm:$0xff]
      %v201 = vld [vmem:[%s166 + $0xd8] sm:$0xff]
      %v202 = vld [vmem:[%s166 + $0xe0] sm:$0xff]
      %v203 = vld [vmem:[%s166 + $0xe8] sm:$0xff]
      %v204 = vld [vmem:[%s166 + $0xf0] sm:$0xff]
      %v205 = vld [vmem:[%s166 + $0xf8] sm:$0xff]
      %v206 = vld [vmem:[%s1] sm:$0xff]
      %v207 = vld [vmem:[%s1 + $0x8] sm:$0xff]
      %v208 = vld [vmem:[%s1 + $0x10] sm:$0xff]
      %v209 = vld [vmem:[%s1 + $0x18] sm:$0x7]
      %vm210 = vcmask 220160
      %v212 = vsel %vm210, %v174, 0
      %v215 = vsel %vm210, %v175, 0
      %v218 = vsel %vm210, %v176, 0
      %v221 = vsel %vm210, %v177, 0
      %v224 = vsel %vm210, %v178, 0
      %v227 = vsel %vm210, %v179, 0
      %v230 = vsel %vm210, %v180, 0
      %v233 = vsel %vm210, %v181, 0
      %v236 = vsel %vm210, %v182, 0
      %v239 = vsel %vm210, %v183, 0
      %v242 = vsel %vm210, %v184, 0
      %v245 = vsel %vm210, %v185, 0
      %v248 = vsel %vm210, %v186, 0
      %v251 = vsel %vm210, %v187, 0
      %v254 = vsel %vm210, %v188, 0
      %v257 = vsel %vm210, %v189, 0
      %v260 = vsel %vm210, %v190, 0
      %v263 = vsel %vm210, %v191, 0
      %v266 = vsel %vm210, %v192, 0
      %v269 = vsel %vm210, %v193, 0
      %v272 = vsel %vm210, %v194, 0
      %v275 = vsel %vm210, %v195, 0
      %v278 = vsel %vm210, %v196, 0
      %v281 = vsel %vm210, %v197, 0
      %v284 = vsel %vm210, %v198, 0
      %v287 = vsel %vm210, %v199, 0
      %v290 = vsel %vm210, %v200, 0
      %v293 = vsel %vm210, %v201, 0
      %v296 = vsel %vm210, %v202, 0
      %v299 = vsel %vm210, %v203, 0
      %v302 = vsel %vm210, %v204, 0
      %v305 = vsel %vm210, %v205, 0
      %vm307 = vcmask 1042432
      %v309 = vsel %vm307, %v209, 0
      %311 = vmatpush.msra.mxu0 0.0
      %312 = vmatpush.msra.mxu0 0.0
      %313 = vmatpush.msra.mxu0 0.0
      %314 = vmatpush.msra.mxu0 0.0
      %315 = vmatpush.msra.mxu0 0.0
      %316 = vmatpush.msra.mxu0 0.0
      %317 = vmatpush.msra.mxu0 0.0
      %318 = vmatpush.msra.mxu0 0.0
      %319 = vmatpush.msra.mxu0 0.0
      %320 = vmatpush.msra.mxu0 0.0
      %321 = vmatpush.msra.mxu0 0.0
      %322 = vmatpush.msra.mxu0 0.0
      %323 = vmatpush.msra.mxu0 %v309
      %324 = vmatpush.msra.mxu0 %v208
      %325 = vmatpush.msra.mxu0 %v207
      %326 = vmatpush.msra.mxu0 %v206
      %327 = vmatmul.f32.gmra.mxu0 %v212
      %v328 = vpop.f32.mrf.mxu0
      %v329 = vadd.f32 0.0, %v328
      %330 = vmatmul.f32.gmra.mxu0 %v215
      %v331 = vpop.f32.mrf.mxu0
      %v332 = vadd.f32 0.0, %v331
      %333 = vmatmul.f32.gmra.mxu0 %v218
      %v334 = vpop.f32.mrf.mxu0
      %v335 = vadd.f32 0.0, %v334
      %336 = vmatmul.f32.gmra.mxu0 %v221
      %v337 = vpop.f32.mrf.mxu0
      %v338 = vadd.f32 0.0, %v337
      %339 = vmatmul.f32.gmra.mxu0 %v224
      %v340 = vpop.f32.mrf.mxu0
      %v341 = vadd.f32 0.0, %v340
      %342 = vmatmul.f32.gmra.mxu0 %v227
      %v343 = vpop.f32.mrf.mxu0
      %v344 = vadd.f32 0.0, %v343
      %345 = vmatmul.f32.gmra.mxu0 %v230
      %v346 = vpop.f32.mrf.mxu0
      %v347 = vadd.f32 0.0, %v346
      %348 = vmatmul.f32.gmra.mxu0 %v233
      %v349 = vpop.f32.mrf.mxu0
      %v350 = vadd.f32 0.0, %v349
      %351 = vmatmul.f32.gmra.mxu0 %v236
      %v352 = vpop.f32.mrf.mxu0
      %v353 = vadd.f32 0.0, %v352
      %354 = vmatmul.f32.gmra.mxu0 %v239
      %v355 = vpop.f32.mrf.mxu0
      %v356 = vadd.f32 0.0, %v355
      %357 = vmatmul.f32.gmra.mxu0 %v242
      %v358 = vpop.f32.mrf.mxu0
      %v359 = vadd.f32 0.0, %v358
      %360 = vmatmul.f32.gmra.mxu0 %v245
      %v361 = vpop.f32.mrf.mxu0
      %v362 = vadd.f32 0.0, %v361
      %363 = vmatmul.f32.gmra.mxu0 %v248
      %v364 = vpop.f32.mrf.mxu0
      %v365 = vadd.f32 0.0, %v364
      %366 = vmatmul.f32.gmra.mxu0 %v251
      %v367 = vpop.f32.mrf.mxu0
      %v368 = vadd.f32 0.0, %v367
      %369 = vmatmul.f32.gmra.mxu0 %v254
      %v370 = vpop.f32.mrf.mxu0
      %v371 = vadd.f32 0.0, %v370
      %372 = vmatmul.f32.gmra.mxu0 %v257
      %v373 = vpop.f32.mrf.mxu0
      %v374 = vadd.f32 0.0, %v373
      %375 = vmatmul.f32.gmra.mxu0 %v260
      %v376 = vpop.f32.mrf.mxu0
      %v377 = vadd.f32 0.0, %v376
      %378 = vmatmul.f32.gmra.mxu0 %v263
      %v379 = vpop.f32.mrf.mxu0
      %v380 = vadd.f32 0.0, %v379
      %381 = vmatmul.f32.gmra.mxu0 %v266
      %v382 = vpop.f32.mrf.mxu0
      %v383 = vadd.f32 0.0, %v382
      %384 = vmatmul.f32.gmra.mxu0 %v269
      %v385 = vpop.f32.mrf.mxu0
      %v386 = vadd.f32 0.0, %v385
      %387 = vmatmul.f32.gmra.mxu0 %v272
      %v388 = vpop.f32.mrf.mxu0
      %v389 = vadd.f32 0.0, %v388
      %390 = vmatmul.f32.gmra.mxu0 %v275
      %v391 = vpop.f32.mrf.mxu0
      %v392 = vadd.f32 0.0, %v391
      %393 = vmatmul.f32.gmra.mxu0 %v278
      %v394 = vpop.f32.mrf.mxu0
      %v395 = vadd.f32 0.0, %v394
      %396 = vmatmul.f32.gmra.mxu0 %v281
      %v397 = vpop.f32.mrf.mxu0
      %v398 = vadd.f32 0.0, %v397
      %399 = vmatmul.f32.gmra.mxu0 %v284
      %v400 = vpop.f32.mrf.mxu0
      %v401 = vadd.f32 0.0, %v400
      %402 = vmatmul.f32.gmra.mxu0 %v287
      %v403 = vpop.f32.mrf.mxu0
      %v404 = vadd.f32 0.0, %v403
      %405 = vmatmul.f32.gmra.mxu0 %v290
      %v406 = vpop.f32.mrf.mxu0
      %v407 = vadd.f32 0.0, %v406
      %408 = vmatmul.f32.gmra.mxu0 %v293
      %v409 = vpop.f32.mrf.mxu0
      %v410 = vadd.f32 0.0, %v409
      %411 = vmatmul.f32.gmra.mxu0 %v296
      %v412 = vpop.f32.mrf.mxu0
      %v413 = vadd.f32 0.0, %v412
      %414 = vmatmul.f32.gmra.mxu0 %v299
      %v415 = vpop.f32.mrf.mxu0
      %v416 = vadd.f32 0.0, %v415
      %417 = vmatmul.f32.gmra.mxu0 %v302
      %v418 = vpop.f32.mrf.mxu0
      %v419 = vadd.f32 0.0, %v418
      %420 = vmatmul.f32.gmra.mxu0 %v305
      %v421 = vpop.f32.mrf.mxu0
      %v422 = vadd.f32 0.0, %v421
      %423 = vdwg.mxu0
      %v424 = vld [vmem:[%s2] sm:$0x3]
      %v425 = vperm.slane %v424, 0
      %v426 = vmul.f32 %v329, %v425
      %v427 = vmul.f32 %v332, %v425
      %v428 = vmul.f32 %v335, %v425
      %v429 = vmul.f32 %v338, %v425
      %v430 = vmul.f32 %v341, %v425
      %v431 = vmul.f32 %v344, %v425
      %v432 = vmul.f32 %v347, %v425
      %v433 = vmul.f32 %v350, %v425
      %v434 = vmul.f32 %v353, %v425
      %v435 = vmul.f32 %v356, %v425
      %v436 = vmul.f32 %v359, %v425
      %v437 = vmul.f32 %v362, %v425
      %v438 = vmul.f32 %v365, %v425
      %v439 = vmul.f32 %v368, %v425
      %v440 = vmul.f32 %v371, %v425
      %v441 = vmul.f32 %v374, %v425
      %v442 = vmul.f32 %v377, %v425
      %v443 = vmul.f32 %v380, %v425
      %v444 = vmul.f32 %v383, %v425
      %v445 = vmul.f32 %v386, %v425
      %v446 = vmul.f32 %v389, %v425
      %v447 = vmul.f32 %v392, %v425
      %v448 = vmul.f32 %v395, %v425
      %v449 = vmul.f32 %v398, %v425
      %v450 = vmul.f32 %v401, %v425
      %v451 = vmul.f32 %v404, %v425
      %v452 = vmul.f32 %v407, %v425
      %v453 = vmul.f32 %v410, %v425
      %v454 = vmul.f32 %v413, %v425
      %v455 = vmul.f32 %v416, %v425
      %v456 = vmul.f32 %v419, %v425
      %v457 = vmul.f32 %v422, %v425
      %v458 = vperm.slane %v424, 1
      %v459 = vadd.f32 %v426, %v458
      %v460 = vadd.f32 %v427, %v458
      %v461 = vadd.f32 %v428, %v458
      %v462 = vadd.f32 %v429, %v458
      %v463 = vadd.f32 %v430, %v458
      %v464 = vadd.f32 %v431, %v458
      %v465 = vadd.f32 %v432, %v458
      %v466 = vadd.f32 %v433, %v458
      %v467 = vadd.f32 %v434, %v458
      %v468 = vadd.f32 %v435, %v458
      %v469 = vadd.f32 %v436, %v458
      %v470 = vadd.f32 %v437, %v458
      %v471 = vadd.f32 %v438, %v458
      %v472 = vadd.f32 %v439, %v458
      %v473 = vadd.f32 %v440, %v458
      %v474 = vadd.f32 %v441, %v458
      %v475 = vadd.f32 %v442, %v458
      %v476 = vadd.f32 %v443, %v458
      %v477 = vadd.f32 %v444, %v458
      %v478 = vadd.f32 %v445, %v458
      %v479 = vadd.f32 %v446, %v458
      %v480 = vadd.f32 %v447, %v458
      %v481 = vadd.f32 %v448, %v458
      %v482 = vadd.f32 %v449, %v458
      %v483 = vadd.f32 %v450, %v458
      %v484 = vadd.f32 %v451, %v458
      %v485 = vadd.f32 %v452, %v458
      %v486 = vadd.f32 %v453, %v458
      %v487 = vadd.f32 %v454, %v458
      %v488 = vadd.f32 %v455, %v458
      %v489 = vadd.f32 %v456, %v458
      %v490 = vadd.f32 %v457, %v458
      %v491 = vadd.f32 %v459, 3.0
      %v492 = vadd.f32 %v460, 3.0
      %v493 = vadd.f32 %v461, 3.0
      %v494 = vadd.f32 %v462, 3.0
      %v495 = vadd.f32 %v463, 3.0
      %v496 = vadd.f32 %v464, 3.0
      %v497 = vadd.f32 %v465, 3.0
      %v498 = vadd.f32 %v466, 3.0
      %v499 = vadd.f32 %v467, 3.0
      %v500 = vadd.f32 %v468, 3.0
      %v501 = vadd.f32 %v469, 3.0
      %v502 = vadd.f32 %v470, 3.0
      %v503 = vadd.f32 %v471, 3.0
      %v504 = vadd.f32 %v472, 3.0
      %v505 = vadd.f32 %v473, 3.0
      %v506 = vadd.f32 %v474, 3.0
      %v507 = vadd.f32 %v475, 3.0
      %v508 = vadd.f32 %v476, 3.0
      %v509 = vadd.f32 %v477, 3.0
      %v510 = vadd.f32 %v478, 3.0
      %v511 = vadd.f32 %v479, 3.0
      %v512 = vadd.f32 %v480, 3.0
      %v513 = vadd.f32 %v481, 3.0
      %v514 = vadd.f32 %v482, 3.0
      %v515 = vadd.f32 %v483, 3.0
      %v516 = vadd.f32 %v484, 3.0
      %v517 = vadd.f32 %v485, 3.0
      %v518 = vadd.f32 %v486, 3.0
      %v519 = vadd.f32 %v487, 3.0
      %v520 = vadd.f32 %v488, 3.0
      %v521 = vadd.f32 %v489, 3.0
      %v522 = vadd.f32 %v490, 3.0
      %v523 = vmax.f32 %v491, 0.0
      %v524 = vmax.f32 %v492, 0.0
      %v525 = vmax.f32 %v493, 0.0
      %v526 = vmax.f32 %v494, 0.0
      %v527 = vmax.f32 %v495, 0.0
      %v528 = vmax.f32 %v496, 0.0
      %v529 = vmax.f32 %v497, 0.0
      %v530 = vmax.f32 %v498, 0.0
      %v531 = vmax.f32 %v499, 0.0
      %v532 = vmax.f32 %v500, 0.0
      %v533 = vmax.f32 %v501, 0.0
      %v534 = vmax.f32 %v502, 0.0
      %v535 = vmax.f32 %v503, 0.0
      %v536 = vmax.f32 %v504, 0.0
      %v537 = vmax.f32 %v505, 0.0
      %v538 = vmax.f32 %v506, 0.0
      %v539 = vmax.f32 %v507, 0.0
      %v540 = vmax.f32 %v508, 0.0
      %v541 = vmax.f32 %v509, 0.0
      %v542 = vmax.f32 %v510, 0.0
      %v543 = vmax.f32 %v511, 0.0
      %v544 = vmax.f32 %v512, 0.0
      %v545 = vmax.f32 %v513, 0.0
      %v546 = vmax.f32 %v514, 0.0
      %v547 = vmax.f32 %v515, 0.0
      %v548 = vmax.f32 %v516, 0.0
      %v549 = vmax.f32 %v517, 0.0
      %v550 = vmax.f32 %v518, 0.0
      %v551 = vmax.f32 %v519, 0.0
      %v552 = vmax.f32 %v520, 0.0
      %v553 = vmax.f32 %v521, 0.0
      %v554 = vmax.f32 %v522, 0.0
      %v555 = vmin.f32 %v523, 6.0
      %v556 = vmin.f32 %v524, 6.0
      %v557 = vmin.f32 %v525, 6.0
      %v558 = vmin.f32 %v526, 6.0
      %v559 = vmin.f32 %v527, 6.0
      %v560 = vmin.f32 %v528, 6.0
      %v561 = vmin.f32 %v529, 6.0
      %v562 = vmin.f32 %v530, 6.0
      %v563 = vmin.f32 %v531, 6.0
      %v564 = vmin.f32 %v532, 6.0
      %v565 = vmin.f32 %v533, 6.0
      %v566 = vmin.f32 %v534, 6.0
      %v567 = vmin.f32 %v535, 6.0
      %v568 = vmin.f32 %v536, 6.0
      %v569 = vmin.f32 %v537, 6.0
      %v570 = vmin.f32 %v538, 6.0
      %v571 = vmin.f32 %v539, 6.0
      %v572 = vmin.f32 %v540, 6.0
      %v573 = vmin.f32 %v541, 6.0
      %v574 = vmin.f32 %v542, 6.0
      %v575 = vmin.f32 %v543, 6.0
      %v576 = vmin.f32 %v544, 6.0
      %v577 = vmin.f32 %v545, 6.0
      %v578 = vmin.f32 %v546, 6.0
      %v579 = vmin.f32 %v547, 6.0
      %v580 = vmin.f32 %v548, 6.0
      %v581 = vmin.f32 %v549, 6.0
      %v582 = vmin.f32 %v550, 6.0
      %v583 = vmin.f32 %v551, 6.0
      %v584 = vmin.f32 %v552, 6.0
      %v585 = vmin.f32 %v553, 6.0
      %v586 = vmin.f32 %v554, 6.0
      %v587 = vmul.f32 %v459, %v555
      %v588 = vmul.f32 %v460, %v556
      %v589 = vmul.f32 %v461, %v557
      %v590 = vmul.f32 %v462, %v558
      %v591 = vmul.f32 %v463, %v559
      %v592 = vmul.f32 %v464, %v560
      %v593 = vmul.f32 %v465, %v561
      %v594 = vmul.f32 %v466, %v562
      %v595 = vmul.f32 %v467, %v563
      %v596 = vmul.f32 %v468, %v564
      %v597 = vmul.f32 %v469, %v565
      %v598 = vmul.f32 %v470, %v566
      %v599 = vmul.f32 %v471, %v567
      %v600 = vmul.f32 %v472, %v568
      %v601 = vmul.f32 %v473, %v569
      %v602 = vmul.f32 %v474, %v570
      %v603 = vmul.f32 %v475, %v571
      %v604 = vmul.f32 %v476, %v572
      %v605 = vmul.f32 %v477, %v573
      %v606 = vmul.f32 %v478, %v574
      %v607 = vmul.f32 %v479, %v575
      %v608 = vmul.f32 %v480, %v576
      %v609 = vmul.f32 %v481, %v577
      %v610 = vmul.f32 %v482, %v578
      %v611 = vmul.f32 %v483, %v579
      %v612 = vmul.f32 %v484, %v580
      %v613 = vmul.f32 %v485, %v581
      %v614 = vmul.f32 %v486, %v582
      %v615 = vmul.f32 %v487, %v583
      %v616 = vmul.f32 %v488, %v584
      %v617 = vmul.f32 %v489, %v585
      %v618 = vmul.f32 %v490, %v586
      %v619 = vmul.f32 %v587, 0.16666667
      %v620 = vmul.f32 %v588, 0.16666667
      %v621 = vmul.f32 %v589, 0.16666667
      %v622 = vmul.f32 %v590, 0.16666667
      %v623 = vmul.f32 %v591, 0.16666667
      %v624 = vmul.f32 %v592, 0.16666667
      %v625 = vmul.f32 %v593, 0.16666667
      %v626 = vmul.f32 %v594, 0.16666667
      %v627 = vmul.f32 %v595, 0.16666667
      %v628 = vmul.f32 %v596, 0.16666667
      %v629 = vmul.f32 %v597, 0.16666667
      %v630 = vmul.f32 %v598, 0.16666667
      %v631 = vmul.f32 %v599, 0.16666667
      %v632 = vmul.f32 %v600, 0.16666667
      %v633 = vmul.f32 %v601, 0.16666667
      %v634 = vmul.f32 %v602, 0.16666667
      %v635 = vmul.f32 %v603, 0.16666667
      %v636 = vmul.f32 %v604, 0.16666667
      %v637 = vmul.f32 %v605, 0.16666667
      %v638 = vmul.f32 %v606, 0.16666667
      %v639 = vmul.f32 %v607, 0.16666667
      %v640 = vmul.f32 %v608, 0.16666667
      %v641 = vmul.f32 %v609, 0.16666667
      %v642 = vmul.f32 %v610, 0.16666667
      %v643 = vmul.f32 %v611, 0.16666667
      %v644 = vmul.f32 %v612, 0.16666667
      %v645 = vmul.f32 %v613, 0.16666667
      %v646 = vmul.f32 %v614, 0.16666667
      %v647 = vmul.f32 %v615, 0.16666667
      %v648 = vmul.f32 %v616, 0.16666667
      %v649 = vmul.f32 %v617, 0.16666667
      %v650 = vmul.f32 %v618, 0.16666667
      %vm651 = vcmask 130048
      %652 = vst.msk [vmem:[%s172] sm:$0xff] %vm651, %v619
      %653 = vst.msk [vmem:[%s172 + $0x8] sm:$0xff] %vm651, %v620
      %654 = vst.msk [vmem:[%s172 + $0x10] sm:$0xff] %vm651, %v621
      %655 = vst.msk [vmem:[%s172 + $0x18] sm:$0xff] %vm651, %v622
      %656 = vst.msk [vmem:[%s172 + $0x20] sm:$0xff] %vm651, %v623
      %657 = vst.msk [vmem:[%s172 + $0x28] sm:$0xff] %vm651, %v624
      %658 = vst.msk [vmem:[%s172 + $0x30] sm:$0xff] %vm651, %v625
      %659 = vst.msk [vmem:[%s172 + $0x38] sm:$0xff] %vm651, %v626
      %660 = vst.msk [vmem:[%s172 + $0x40] sm:$0xff] %vm651, %v627
      %661 = vst.msk [vmem:[%s172 + $0x48] sm:$0xff] %vm651, %v628
      %662 = vst.msk [vmem:[%s172 + $0x50] sm:$0xff] %vm651, %v629
      %663 = vst.msk [vmem:[%s172 + $0x58] sm:$0xff] %vm651, %v630
      %664 = vst.msk [vmem:[%s172 + $0x60] sm:$0xff] %vm651, %v631
      %665 = vst.msk [vmem:[%s172 + $0x68] sm:$0xff] %vm651, %v632
      %666 = vst.msk [vmem:[%s172 + $0x70] sm:$0xff] %vm651, %v633
      %667 = vst.msk [vmem:[%s172 + $0x78] sm:$0xff] %vm651, %v634
      %668 = vst.msk [vmem:[%s172 + $0x80] sm:$0xff] %vm651, %v635
      %669 = vst.msk [vmem:[%s172 + $0x88] sm:$0xff] %vm651, %v636
      %670 = vst.msk [vmem:[%s172 + $0x90] sm:$0xff] %vm651, %v637
      %671 = vst.msk [vmem:[%s172 + $0x98] sm:$0xff] %vm651, %v638
      %672 = vst.msk [vmem:[%s172 + $0xa0] sm:$0xff] %vm651, %v639
      %673 = vst.msk [vmem:[%s172 + $0xa8] sm:$0xff] %vm651, %v640
      %674 = vst.msk [vmem:[%s172 + $0xb0] sm:$0xff] %vm651, %v641
      %675 = vst.msk [vmem:[%s172 + $0xb8] sm:$0xff] %vm651, %v642
      %676 = vst.msk [vmem:[%s172 + $0xc0] sm:$0xff] %vm651, %v643
      %677 = vst.msk [vmem:[%s172 + $0xc8] sm:$0xff] %vm651, %v644
      %678 = vst.msk [vmem:[%s172 + $0xd0] sm:$0xff] %vm651, %v645
      %679 = vst.msk [vmem:[%s172 + $0xd8] sm:$0xff] %vm651, %v646
      %680 = vst.msk [vmem:[%s172 + $0xe0] sm:$0xff] %vm651, %v647
      %681 = vst.msk [vmem:[%s172 + $0xe8] sm:$0xff] %vm651, %v648
      %682 = vst.msk [vmem:[%s172 + $0xf0] sm:$0xff] %vm651, %v649
      %683 = vst.msk [vmem:[%s172 + $0xf8] sm:$0xff] %vm651, %v650
      %s684 = smul.u32 32, %s14
      %p685 = scmp.lt.s32.totalorder %s684, 63
      %s686 = scalar_select %p685, %s684, 63
      %s687 = smul.addr %s686, 8
      %s688 = scalar_lea.vmem %s3, %s687
      // Predicated region
      $region33: #{tpu_custom_call.1} parent=31 // pred_check
        %p689 = pneg %p100
      $region34: #{tpu_custom_call.1} parent=31 // pred_check_branch
        %691 = sbr.rel (%p689) target = $region36
      $region35: #{tpu_custom_call.1} parent=31 // pred_region
        %s692 = smul.u32 32, %s14
      $region36: #{tpu_custom_call.1} parent=31 // pred_fallthru
        _
    $region32: #{tpu_custom_call.1} parent=5 // pred_fallthru
      _
    %p693 = scmp.le.s32.totalorder 2, %s9
    // Predicated region
    $region37: #{tpu_custom_call.1} parent=5 // pred_check
      %p694 = pneg %p693
    $region38: #{tpu_custom_call.1} parent=5 // pred_check_branch
      %696 = sbr.rel (%p694) target = $region40
    $region39: #{tpu_custom_call.1} parent=5 // pred_region
      %s697 = ssub.s32 %s9, 2
      // Predicated region
      $region41: #{tpu_custom_call.1} parent=39 // pred_check
        %p698 = pneg %p106
      $region42: #{tpu_custom_call.1} parent=39 // pred_check_branch
        %700 = sbr.rel (%p698) target = $region44
      $region43: #{tpu_custom_call.1} parent=39 // pred_region
        %s701 = smul.u32 32, %s15
        %p702 = scmp.lt.s32.totalorder %s701, 63
        %s703 = scalar_select %p702, %s701, 63
        %s704 = smul.addr %s703, 8
        %s705 = scalar_lea.vmem %s3, %s704
      $region44: #{tpu_custom_call.1} parent=39 // pred_fallthru
        _
    $region40: #{tpu_custom_call.1} parent=5 // pred_fallthru
      _
  $region6: #{tpu_custom_call.1} parent=0 // loop_footer
    %s13 = sadd.s32 1, %s9
  $region7: #{tpu_custom_call.1} parent=0 // loop_footer_branch
    %8 = sbr.rel target = $region3
  $region8: #{tpu_custom_call.1} parent=0 // loop_exit
    _

</llo_original>
